<compile_context>
chip_gen: v6e
topology: v6e:2x2x1
jax: 0.10.0
libtpu: 0.0.40
codegen_flags: <defaults>
</compile_context>

<pallas_src>
import jax
import jax.numpy as jnp
from jax import lax
from jax.experimental import pallas as pl
from jax.experimental.pallas import tpu as pltpu

EPS = 1e-5


def _patch_embed_kernel(x_ref, w_ref, b_ref, g_ref, beta_ref, o_ref):
    # x_ref: (tm, Kp) bf16 patch rows, w_ref: (Kp, N) bf16 flattened conv weight,
    # b_ref/g_ref/beta_ref: (1, N) f32 conv bias / LN gamma / LN beta.
    acc = jnp.dot(x_ref[...], w_ref[...], preferred_element_type=jnp.float32)
    acc = acc + b_ref[...]

    n = acc.shape[-1]
    inv_n = jnp.float32(1.0 / n)
    s = jnp.sum(acc, axis=-1, keepdims=True)
    ss = jnp.sum(acc * acc, axis=-1, keepdims=True)
    mean = s * inv_n
    var = ss * inv_n - mean * mean
    inv_std = lax.rsqrt(var + EPS)

    o_ref[...] = ((acc - mean) * inv_std * g_ref[...] + beta_ref[...]).astype(o_ref.dtype)


def _round_up(a, b):
    return ((a + b - 1) // b) * b


def special_patch_embed(x, weight, bias, gamma, beta, patch_size, tm=None):
    """x: (B, C, T, H, W) f32; weight: (N, C, 3, p, p); bias/gamma/beta: (N,).

    Returns (B, embed_dim, T', H', W') float32, matching the PyTorch module.
    """
    B, C, T, H, W = x.shape
    p = patch_size
    N = weight.shape[0]
    T_out = (T + 2 - 3) // 2 + 1      # conv3d temporal out (k=3, s=2, pad=1)
    Hp, Wp = H // p, W // p

    # ---- glue: im2col.  Cast to bf16 FIRST so the pad/stack/transpose copies
    # move half the bytes through HBM. ----
    xb = x.astype(jnp.bfloat16)
    x_pad = jnp.pad(xb, ((0, 0), (0, 0), (1, 1), (0, 0), (0, 0)))
    slices = [x_pad[:, :, kt:kt + 2 * T_out:2] for kt in range(3)]   # each (B,C,T_out,H,W)
    xk = jnp.stack(slices, axis=3)                                   # (B,C,T_out,3,H,W)
    xk = xk.reshape(B, C, T_out, 3, Hp, p, Wp, p)
    xk = xk.transpose(0, 2, 4, 6, 1, 3, 5, 7)                        # (B,T_out,Hp,Wp,C,3,p,p)

    K = C * 3 * p * p
    M = B * T_out * Hp * Wp
    patches = xk.reshape(M, K)                                       # bf16 (M, K)

    # Pad K to a multiple of 128 for clean lane tiling / full MXU passes (zeros are free).
    Kp = max(128, _round_up(K, 128))
    if Kp != K:
        patches = jnp.pad(patches, ((0, 0), (0, Kp - K)))

    w_flat = weight.reshape(N, K).T.astype(jnp.bfloat16)             # (K, N) bf16
    if Kp != K:
        w_flat = jnp.pad(w_flat, ((0, Kp - K), (0, 0)))

    b2 = bias.reshape(1, N).astype(jnp.float32)
    g2 = gamma.reshape(1, N).astype(jnp.float32)
    beta2 = beta.reshape(1, N).astype(jnp.float32)

    # ---- row tile: as large as VMEM comfortably allows; single tile for tiny M. ----
    if tm is None:
        tm = min(1024, _round_up(M, 8))
    tm = max(8, _round_up(tm, 8))
    M_pad = _round_up(M, tm)
    if M_pad != M:
        patches = jnp.pad(patches, ((0, M_pad - M), (0, 0)))         # garbage rows sliced later
    grid = (M_pad // tm,)

    flops = 2 * M_pad * Kp * N + 8 * M_pad * N
    bytes_accessed = (M_pad * Kp * 2 + Kp * N * 2 + 3 * N * 4 + M_pad * N * 4)
    cost = pl.CostEstimate(flops=flops, transcendentals=M_pad,
                           bytes_accessed=bytes_accessed)

    out = pl.pallas_call(
        _patch_embed_kernel,
        out_shape=jax.ShapeDtypeStruct((M_pad, N), jnp.float32),
        grid_spec=pltpu.PrefetchScalarGridSpec(
            num_scalar_prefetch=0,
            grid=grid,
            in_specs=[
                pl.BlockSpec((tm, Kp), lambda i: (i, 0)),   # patch rows, tiled over M
                pl.BlockSpec((Kp, N), lambda i: (0, 0)),    # full weight, resident
                pl.BlockSpec((1, N), lambda i: (0, 0)),     # conv bias
                pl.BlockSpec((1, N), lambda i: (0, 0)),     # LN gamma
                pl.BlockSpec((1, N), lambda i: (0, 0)),     # LN beta
            ],
            out_specs=pl.BlockSpec((tm, N), lambda i: (i, 0)),
        ),
        compiler_params=pltpu.CompilerParams(
            dimension_semantics=("parallel",)),
        cost_estimate=cost,
    )(patches, w_flat, b2, g2, beta2)

    out = out[:M]
    # back to (B, embed_dim, T_out, H', W')
    out = out.reshape(B, T_out, Hp, Wp, N).transpose(0, 4, 1, 2, 3)
    return out


def _reference(x, weight, bias, gamma, beta, p):
    """Pure-JAX reference mirroring the PyTorch forward exactly (f32)."""
    y = lax.conv_general_dilated(
        x, weight, window_strides=(2, p, p),
        padding=[(1, 1), (0, 0), (0, 0)],
        dimension_numbers=("NCDHW", "OIDHW", "NCDHW"))
    y = y + bias.reshape(1, -1, 1, 1, 1)
    B, Cq, T, H, W = y.shape
    z = y.reshape(B, Cq, T * H * W).transpose(0, 2, 1)               # (B, THW, C)
    mean = z.mean(-1, keepdims=True)
    var = ((z - mean) ** 2).mean(-1, keepdims=True)
    zn = (z - mean) / jnp.sqrt(var + EPS) * gamma + beta
    return zn.reshape(B, T, H, W, Cq).transpose(0, 4, 1, 2, 3)


if __name__ == "__main__":
    # Small shapes consistent with the module: img=16, patch=4, in_chans=3,
    # embed_dim=128, T=8  ->  conv out (B, 128, 4, 4, 4).
    B, C, T, H, W = 2, 3, 8, 16, 16
    p = 4
    embed_dim = 128

    key = jax.random.PRNGKey(0)
    kx, kw, kb = jax.random.split(key, 3)
    x = jax.random.normal(kx, (B, C, T, H, W), dtype=jnp.float32)
    weight = jax.random.normal(kw, (embed_dim, C, 3, p, p), dtype=jnp.float32) * 0.02
    bias = jax.random.normal(kb, (embed_dim,), dtype=jnp.float32) * 0.02
    gamma = jnp.ones((embed_dim,), dtype=jnp.float32)   # nn.LayerNorm default
    beta = jnp.zeros((embed_dim,), dtype=jnp.float32)   # nn.LayerNorm default

    out = special_patch_embed(x, weight, bias, gamma, beta, patch_size=p)
    out = jax.block_until_ready(out)

    # Tight check against a reference fed the same bf16-quantized inputs (kernel
    # accumulates in f32, so only accumulation-order noise remains) ...
    xq = x.astype(jnp.bfloat16).astype(jnp.float32)
    wq = weight.astype(jnp.bfloat16).astype(jnp.float32)
    ref_q = _reference(xq, wq, bias, gamma, beta, p)
    # ... plus a loose sanity check against the full-f32 PyTorch-equivalent reference.
    ref_f32 = _reference(x, weight, bias, gamma, beta, p)

    assert out.shape == ref_f32.shape == (B, embed_dim, 4, H // p, W // p)
    assert jnp.allclose(out, ref_q, atol=2e-3, rtol=2e-3)
    assert jnp.allclose(out, ref_f32, atol=8e-2, rtol=8e-2)

    print("KERNEL_OK")
</pallas_src>

<mosaic_0001>
module attributes {stable_mosaic.version = 11 : i64} {
  func.func @_patch_embed_kernel(%arg0: i32, %arg1: memref<128x256xbf16, #tpu.memory_space<vmem>>, %arg2: memref<256x128xbf16, #tpu.memory_space<vmem>>, %arg3: memref<1x128xf32, #tpu.memory_space<vmem>>, %arg4: memref<1x128xf32, #tpu.memory_space<vmem>>, %arg5: memref<1x128xf32, #tpu.memory_space<vmem>>, %arg6: memref<128x128xf32, #tpu.memory_space<vmem>>) attributes {dimension_semantics = [#tpu.dimension_semantics<parallel>], iteration_bounds = array<i64: 1>, scalar_prefetch = 0 : i64, scratch_operands = 0 : i64, tpu.core_type = #tpu.core_type<tc>, window_params = [{transform_indices = @transform_0, window_bounds = array<i64: 128, 256>}, {pipeline_mode = #tpu.pipeline_mode<synchronous>, transform_indices = @transform_1, window_bounds = array<i64: 256, 128>}, {pipeline_mode = #tpu.pipeline_mode<synchronous>, transform_indices = @transform_2, window_bounds = array<i64: 1, 128>}, {pipeline_mode = #tpu.pipeline_mode<synchronous>, transform_indices = @transform_3, window_bounds = array<i64: 1, 128>}, {pipeline_mode = #tpu.pipeline_mode<synchronous>, transform_indices = @transform_4, window_bounds = array<i64: 1, 128>}, {transform_indices = @transform_5, window_bounds = array<i64: 128, 128>}]} {
    %c0 = arith.constant 0 : index
    %c0_0 = arith.constant 0 : index
    %0 = vector.load %arg1[%c0, %c0_0] : memref<128x256xbf16, #tpu.memory_space<vmem>>, vector<128x256xbf16>
    %c0_1 = arith.constant 0 : index
    %c0_2 = arith.constant 0 : index
    %1 = vector.load %arg2[%c0_1, %c0_2] : memref<256x128xbf16, #tpu.memory_space<vmem>>, vector<256x128xbf16>
    %cst = arith.constant dense<0.000000e+00> : vector<128x128xf32>
    %2 = tpu.matmul %0, %1, %cst {dimension_numbers = #tpu.dot_dimension_numbers<[1], [0], [0], [1], [0, 0, 1, 1], [], []>} : vector<128x256xbf16>, vector<256x128xbf16>, vector<128x128xf32> -> vector<128x128xf32>
    %c0_3 = arith.constant 0 : index
    %c0_4 = arith.constant 0 : index
    %3 = vector.load %arg3[%c0_3, %c0_4] : memref<1x128xf32, #tpu.memory_space<vmem>>, vector<1x128xf32>
    %4 = vector.broadcast %3 : vector<1x128xf32> to vector<128x128xf32>
    %5 = arith.addf %2, %4 : vector<128x128xf32>
    %cst_5 = arith.constant dense<0.000000e+00> : vector<128xf32>
    %6 = vector.multi_reduction <add>, %5, %cst_5 [1] : vector<128x128xf32> to vector<128xf32>
    %7 = vector.shape_cast %6 : vector<128xf32> to vector<128x1xf32>
    %8 = arith.mulf %5, %5 : vector<128x128xf32>
    %cst_6 = arith.constant dense<0.000000e+00> : vector<128xf32>
    %9 = vector.multi_reduction <add>, %8, %cst_6 [1] : vector<128x128xf32> to vector<128xf32>
    %10 = vector.shape_cast %9 : vector<128xf32> to vector<128x1xf32>
    %cst_7 = arith.constant 7.812500e-03 : f32
    %11 = vector.broadcast %cst_7 : f32 to vector<128x1xf32>
    %12 = arith.mulf %7, %11 : vector<128x1xf32>
    %cst_8 = arith.constant 7.812500e-03 : f32
    %13 = vector.broadcast %cst_8 : f32 to vector<128x1xf32>
    %14 = arith.mulf %10, %13 : vector<128x1xf32>
    %15 = arith.mulf %12, %12 : vector<128x1xf32>
    %16 = arith.subf %14, %15 : vector<128x1xf32>
    %cst_9 = arith.constant 9.99999974E-6 : f32
    %17 = vector.broadcast %cst_9 : f32 to vector<128x1xf32>
    %18 = arith.addf %16, %17 : vector<128x1xf32>
    %19 = math.rsqrt %18 : vector<128x1xf32>
    %20 = vector.broadcast %12 : vector<128x1xf32> to vector<128x128xf32>
    %21 = arith.subf %5, %20 : vector<128x128xf32>
    %22 = vector.broadcast %19 : vector<128x1xf32> to vector<128x128xf32>
    %23 = arith.mulf %21, %22 : vector<128x128xf32>
    %c0_10 = arith.constant 0 : index
    %c0_11 = arith.constant 0 : index
    %24 = vector.load %arg4[%c0_10, %c0_11] : memref<1x128xf32, #tpu.memory_space<vmem>>, vector<1x128xf32>
    %25 = vector.broadcast %24 : vector<1x128xf32> to vector<128x128xf32>
    %26 = arith.mulf %23, %25 : vector<128x128xf32>
    %c0_12 = arith.constant 0 : index
    %c0_13 = arith.constant 0 : index
    %27 = vector.load %arg5[%c0_12, %c0_13] : memref<1x128xf32, #tpu.memory_space<vmem>>, vector<1x128xf32>
    %28 = vector.broadcast %27 : vector<1x128xf32> to vector<128x128xf32>
    %29 = arith.addf %26, %28 : vector<128x128xf32>
    %c0_14 = arith.constant 0 : index
    %c0_15 = arith.constant 0 : index
    %30 = vector.load %arg6[%c0_14, %c0_15] : memref<128x128xf32, #tpu.memory_space<vmem>>, vector<128x128xf32>
    tpu.vector_store %arg6[%c0_14, %c0_15], %29 {strides = array<i32>} : memref<128x128xf32, #tpu.memory_space<vmem>>, vector<128x128xf32>,
    return
  }
  func.func @transform_0(%arg0: i32) -> (i32, i32) {
    %c0_i32 = arith.constant 0 : i32
    %c0_i32_0 = arith.constant 0 : i32
    return %arg0, %c0_i32 : i32, i32
  }
  func.func @transform_1(%arg0: i32) -> (i32, i32) {
    %c0_i32 = arith.constant 0 : i32
    %c0_i32_0 = arith.constant 0 : i32
    %c0_i32_1 = arith.constant 0 : i32
    return %c0_i32, %c0_i32_0 : i32, i32
  }
  func.func @transform_2(%arg0: i32) -> (i32, i32) {
    %c0_i32 = arith.constant 0 : i32
    %c0_i32_0 = arith.constant 0 : i32
    %c0_i32_1 = arith.constant 0 : i32
    return %c0_i32, %c0_i32_0 : i32, i32
  }
  func.func @transform_3(%arg0: i32) -> (i32, i32) {
    %c0_i32 = arith.constant 0 : i32
    %c0_i32_0 = arith.constant 0 : i32
    %c0_i32_1 = arith.constant 0 : i32
    return %c0_i32, %c0_i32_0 : i32, i32
  }
  func.func @transform_4(%arg0: i32) -> (i32, i32) {
    %c0_i32 = arith.constant 0 : i32
    %c0_i32_0 = arith.constant 0 : i32
    %c0_i32_1 = arith.constant 0 : i32
    return %c0_i32, %c0_i32_0 : i32, i32
  }
  func.func @transform_5(%arg0: i32) -> (i32, i32) {
    %c0_i32 = arith.constant 0 : i32
    %c0_i32_0 = arith.constant 0 : i32
    return %arg0, %c0_i32 : i32, i32
  }
}

</mosaic_0001>

<llo_original>
// kernel: tpu_custom_call.1
$region0: #{tpu_custom_call.1}
  #allocation0 [shape = 'u32[]', space=smem, size = 0x4, offset = 0x4, fixed_abs, tag = 'smem constant byte address 0x4 - core index']
  #allocation1 [shape = 'u32[144,128]{1,0:T(1,128)}', space=vmem, size = 0x12000, scoped, tag = 'internal scratch']
  %s0 = inlined_call_operand.hbm [shape: bf16[128,256], index: 0, kind: input, shape index: {}]
  %s1 = inlined_call_operand.hbm [shape: bf16[256,128], index: 1, kind: input, shape index: {}]
  %s2 = inlined_call_operand.vmem [shape: f32[1,128], index: 2, kind: input, shape index: {}]
  %s3 = inlined_call_operand.vmem [shape: f32[1,128], index: 3, kind: input, shape index: {}]
  %s4 = inlined_call_operand.vmem [shape: f32[1,128], index: 4, kind: input, shape index: {}]
  %s5 = inlined_call_operand.hbm [shape: f32[128,128], index: 5, kind: output, shape index: {}]
  %s6 = sld [smem:[#allocation0]]
  $region38: #{tpu_custom_call.1} parent=0
    _
  %s8 = ssub.s32 1, %s6
  %s9 = scalar_select 0, %s8, %s6
  $region1: #{tpu_custom_call.1} parent=0
    #allocation2 [shape = 'u8[65536]{0}', space=vmem, size = 0x10000, scoped, tag = 'input window, operand 0, single buffered']
    #allocation3 [shape = 's32[1]{0}', space=sflag, size = 0x4, scoped, tag = 'scoped memory for tpu_custom_call.1']
    #allocation4 [shape = 's32[1]{0}', space=sflag, size = 0x4, scoped, tag = 'scoped memory for tpu_custom_call.1']
    #allocation5 [shape = 'u8[65536]{0}', space=vmem, size = 0x10000, scoped, tag = 'input window, operand 1, single buffered']
    #allocation6 [shape = 's32[1]{0}', space=sflag, size = 0x4, scoped, tag = 'scoped memory for tpu_custom_call.1']
    #allocation7 [shape = 'u8[65536]{0}', space=vmem, size = 0x10000, scoped, tag = 'output window, operand 0, single buffered']
    %10 = vsyncpa [#allocation3], 0
    %11 = vsyncpa [#allocation6], 0
    %12 = vsyncpa [#allocation4], 0
    // Predicated region
    $region2: #{tpu_custom_call.1} parent=1 // pred_check
      _
    $region3: #{tpu_custom_call.1} parent=1 // pred_check_branch
      %14 = sbr.rel (0) target = $region5
    $region4: #{tpu_custom_call.1} parent=1 // pred_region
      %s16 = ssub.s32 2048, 2048
      %17 = vsyncadd [#allocation3], %s16
      %s18 = sshll.u32 [#allocation2], 4
      %s19 = int_to_ptr.vmem [resolvable:$true] %s18
      %24 = dma.hbm_to_vmem [thread:$0]  %s0, 2048, %s19, [#allocation3], 128, 128, 8
    $region5: #{tpu_custom_call.1} parent=1 // pred_fallthru
      _
    // Predicated region
    $region6: #{tpu_custom_call.1} parent=1 // pred_check
      _
    $region7: #{tpu_custom_call.1} parent=1 // pred_check_branch
      %26 = sbr.rel (0) target = $region9
    $region8: #{tpu_custom_call.1} parent=1 // pred_region
      %s28 = ssub.s32 2048, 2048
      %29 = vsyncadd [#allocation6], %s28
      %s30 = sshll.u32 [#allocation5], 4
      %s31 = int_to_ptr.vmem [resolvable:$true] %s30
      %36 = dma.hbm_to_vmem [thread:$0]  %s1, 2048, %s31, [#allocation6], 64, 64, 4
    $region9: #{tpu_custom_call.1} parent=1 // pred_fallthru
      _
    // Predicated region
    $region10: #{tpu_custom_call.1} parent=1 // pred_check
      _
    $region11: #{tpu_custom_call.1} parent=1 // pred_check_branch
      %38 = sbr.rel (0) target = $region13
    $region12: #{tpu_custom_call.1} parent=1 // pred_region
      _
    $region13: #{tpu_custom_call.1} parent=1 // pred_fallthru
      _
    // Predicated region
    $region14: #{tpu_custom_call.1} parent=1 // pred_check
      _
    $region15: #{tpu_custom_call.1} parent=1 // pred_check_branch
      %40 = sbr.rel (0) target = $region17
    $region16: #{tpu_custom_call.1} parent=1 // pred_region
      _
    $region17: #{tpu_custom_call.1} parent=1 // pred_fallthru
      _
    // Predicated region
    $region18: #{tpu_custom_call.1} parent=1 // pred_check
      _
    $region19: #{tpu_custom_call.1} parent=1 // pred_check_branch
      %42 = sbr.rel (0) target = $region21
    $region20: #{tpu_custom_call.1} parent=1 // pred_region
      _
    $region21: #{tpu_custom_call.1} parent=1 // pred_fallthru
      _
    // Predicated region
    $region22: #{tpu_custom_call.1} parent=1 // pred_check
      _
    $region23: #{tpu_custom_call.1} parent=1 // pred_check_branch
      %44 = sbr.rel (0) target = $region25
    $region24: #{tpu_custom_call.1} parent=1 // pred_region
      %45 = dma.done [#allocation3], 2048
    $region25: #{tpu_custom_call.1} parent=1 // pred_fallthru
      _
    // Predicated region
    $region26: #{tpu_custom_call.1} parent=1 // pred_check
      _
    $region27: #{tpu_custom_call.1} parent=1 // pred_check_branch
      %47 = sbr.rel (0) target = $region29
    $region28: #{tpu_custom_call.1} parent=1 // pred_region
      %48 = dma.done [#allocation6], 2048
    $region29: #{tpu_custom_call.1} parent=1 // pred_fallthru
      _
    %v50 = vld [vmem:[#allocation2] sm:$0xff]
    %v51 = vld [vmem:[#allocation2 + $0x8] sm:$0xff]
    %v52 = vld [vmem:[#allocation2 + $0x10] sm:$0xff]
    %v53 = vld [vmem:[#allocation2 + $0x18] sm:$0xff]
    %v54 = vld [vmem:[#allocation2 + $0x20] sm:$0xff]
    %v55 = vld [vmem:[#allocation2 + $0x28] sm:$0xff]
    %v56 = vld [vmem:[#allocation2 + $0x30] sm:$0xff]
    %v57 = vld [vmem:[#allocation2 + $0x38] sm:$0xff]
    %v58 = vld [vmem:[#allocation2 + $0x40] sm:$0xff]
    %v59 = vld [vmem:[#allocation2 + $0x48] sm:$0xff]
    %v60 = vld [vmem:[#allocation2 + $0x50] sm:$0xff]
    %v61 = vld [vmem:[#allocation2 + $0x58] sm:$0xff]
    %v62 = vld [vmem:[#allocation2 + $0x60] sm:$0xff]
    %v63 = vld [vmem:[#allocation2 + $0x68] sm:$0xff]
    %v64 = vld [vmem:[#allocation2 + $0x70] sm:$0xff]
    %v65 = vld [vmem:[#allocation2 + $0x78] sm:$0xff]
    %v66 = vld [vmem:[#allocation5] sm:$0xf]
    %v67 = vld [vmem:[#allocation5 + $0x4] sm:$0xf]
    %v68 = vld [vmem:[#allocation5 + $0x8] sm:$0xf]
    %v69 = vld [vmem:[#allocation5 + $0xc] sm:$0xf]
    %v70 = vld [vmem:[#allocation5 + $0x10] sm:$0xf]
    %v71 = vld [vmem:[#allocation5 + $0x14] sm:$0xf]
    %v72 = vld [vmem:[#allocation5 + $0x18] sm:$0xf]
    %v73 = vld [vmem:[#allocation5 + $0x1c] sm:$0xf]
    %v74 = vld [vmem:[#allocation5 + $0x20] sm:$0xf]
    %v75 = vld [vmem:[#allocation5 + $0x24] sm:$0xf]
    %v76 = vld [vmem:[#allocation5 + $0x28] sm:$0xf]
    %v77 = vld [vmem:[#allocation5 + $0x2c] sm:$0xf]
    %v78 = vld [vmem:[#allocation5 + $0x30] sm:$0xf]
    %v79 = vld [vmem:[#allocation5 + $0x34] sm:$0xf]
    %v80 = vld [vmem:[#allocation5 + $0x38] sm:$0xf]
    %v81 = vld [vmem:[#allocation5 + $0x3c] sm:$0xf]
    %v82 = vld [vmem:[#allocation5 + $0x40] sm:$0xf]
    %v83 = vld [vmem:[#allocation5 + $0x44] sm:$0xf]
    %v84 = vld [vmem:[#allocation5 + $0x48] sm:$0xf]
    %v85 = vld [vmem:[#allocation5 + $0x4c] sm:$0xf]
    %v86 = vld [vmem:[#allocation5 + $0x50] sm:$0xf]
    %v87 = vld [vmem:[#allocation5 + $0x54] sm:$0xf]
    %v88 = vld [vmem:[#allocation5 + $0x58] sm:$0xf]
    %v89 = vld [vmem:[#allocation5 + $0x5c] sm:$0xf]
    %v90 = vld [vmem:[#allocation5 + $0x60] sm:$0xf]
    %v91 = vld [vmem:[#allocation5 + $0x64] sm:$0xf]
    %v92 = vld [vmem:[#allocation5 + $0x68] sm:$0xf]
    %v93 = vld [vmem:[#allocation5 + $0x6c] sm:$0xf]
    %v94 = vld [vmem:[#allocation5 + $0x70] sm:$0xf]
    %v95 = vld [vmem:[#allocation5 + $0x74] sm:$0xf]
    %v96 = vld [vmem:[#allocation5 + $0x78] sm:$0xf]
    %v97 = vld [vmem:[#allocation5 + $0x7c] sm:$0xf]
    %v98 = vld [vmem:[%s2] sm:$0x1]
    %v100 = vlaneseq
    %v101 = vshrl.u32 %v100, 7
    %v102 = vsub.s32 0, %v101
    %v103 = vrot.slane %v98, %v102
    %v121 = vunpack.c.l.b16 %v50
    %v122 = vunpack.c.h.b16 %v50
    %v123 = vunpack.c.l.b16 %v51
    %v124 = vunpack.c.h.b16 %v51
    %v125 = vunpack.c.l.b16 %v52
    %v126 = vunpack.c.h.b16 %v52
    %v127 = vunpack.c.l.b16 %v53
    %v128 = vunpack.c.h.b16 %v53
    %v129 = vunpack.c.l.b16 %v54
    %v130 = vunpack.c.h.b16 %v54
    %v131 = vunpack.c.l.b16 %v55
    %v132 = vunpack.c.h.b16 %v55
    %v133 = vunpack.c.l.b16 %v56
    %v134 = vunpack.c.h.b16 %v56
    %v135 = vunpack.c.l.b16 %v57
    %v136 = vunpack.c.h.b16 %v57
    %v137 = vunpack.c.l.b16 %v58
    %v138 = vunpack.c.h.b16 %v58
    %v139 = vunpack.c.l.b16 %v59
    %v140 = vunpack.c.h.b16 %v59
    %v141 = vunpack.c.l.b16 %v60
    %v142 = vunpack.c.h.b16 %v60
    %v143 = vunpack.c.l.b16 %v61
    %v144 = vunpack.c.h.b16 %v61
    %v145 = vunpack.c.l.b16 %v62
    %v146 = vunpack.c.h.b16 %v62
    %v147 = vunpack.c.l.b16 %v63
    %v148 = vunpack.c.h.b16 %v63
    %v149 = vunpack.c.l.b16 %v64
    %v150 = vunpack.c.h.b16 %v64
    %v151 = vunpack.c.l.b16 %v65
    %v152 = vunpack.c.h.b16 %v65
    %v153 = vpack.c.b16 %v123, %v121
    %v154 = vpack.c.b16 %v124, %v122
    %v155 = vpack.c.b16 %v127, %v125
    %v156 = vpack.c.b16 %v128, %v126
    %v157 = vpack.c.b16 %v131, %v129
    %v158 = vpack.c.b16 %v132, %v130
    %v159 = vpack.c.b16 %v135, %v133
    %v160 = vpack.c.b16 %v136, %v134
    %v161 = vpack.c.b16 %v139, %v137
    %v162 = vpack.c.b16 %v140, %v138
    %v163 = vpack.c.b16 %v143, %v141
    %v164 = vpack.c.b16 %v144, %v142
    %v165 = vpack.c.b16 %v147, %v145
    %v166 = vpack.c.b16 %v148, %v146
    %v167 = vpack.c.b16 %v151, %v149
    %v168 = vpack.c.b16 %v152, %v150
    %v217 = vunpack.c.l.b16 %v66
    %v218 = vunpack.c.l.b16 %v67
    %v219 = vunpack.c.l.b16 %v68
    %v220 = vunpack.c.l.b16 %v69
    %v221 = vunpack.c.l.b16 %v70
    %v222 = vunpack.c.l.b16 %v71
    %v223 = vunpack.c.l.b16 %v72
    %v224 = vunpack.c.l.b16 %v73
    %v225 = vunpack.c.l.b16 %v74
    %v226 = vunpack.c.l.b16 %v75
    %v227 = vunpack.c.l.b16 %v76
    %v228 = vunpack.c.l.b16 %v77
    %v229 = vunpack.c.l.b16 %v78
    %v230 = vunpack.c.l.b16 %v79
    %v231 = vunpack.c.l.b16 %v80
    %v232 = vunpack.c.l.b16 %v81
    %v233 = vunpack.c.l.b16 %v82
    %v234 = vunpack.c.l.b16 %v83
    %v235 = vunpack.c.l.b16 %v84
    %v236 = vunpack.c.l.b16 %v85
    %v237 = vunpack.c.l.b16 %v86
    %v238 = vunpack.c.l.b16 %v87
    %v239 = vunpack.c.l.b16 %v88
    %v240 = vunpack.c.l.b16 %v89
    %v241 = vunpack.c.l.b16 %v90
    %v242 = vunpack.c.l.b16 %v91
    %v243 = vunpack.c.l.b16 %v92
    %v244 = vunpack.c.l.b16 %v93
    %v245 = vunpack.c.l.b16 %v94
    %v246 = vunpack.c.l.b16 %v95
    %v247 = vunpack.c.l.b16 %v96
    %v248 = vunpack.c.l.b16 %v97
    %v249 = vpack.c.b16 %v218, %v217
    %v250 = vpack.c.b16 %v220, %v219
    %v251 = vpack.c.b16 %v222, %v221
    %v252 = vpack.c.b16 %v224, %v223
    %v253 = vpack.c.b16 %v226, %v225
    %v254 = vpack.c.b16 %v228, %v227
    %v255 = vpack.c.b16 %v230, %v229
    %v256 = vpack.c.b16 %v232, %v231
    %v257 = vpack.c.b16 %v234, %v233
    %v258 = vpack.c.b16 %v236, %v235
    %v259 = vpack.c.b16 %v238, %v237
    %v260 = vpack.c.b16 %v240, %v239
    %v261 = vpack.c.b16 %v242, %v241
    %v262 = vpack.c.b16 %v244, %v243
    %v263 = vpack.c.b16 %v246, %v245
    %v264 = vpack.c.b16 %v248, %v247
    %281 = vmatprep.subr.bf16.mxu0 0
    %282 = vmatpush1.bf16.msra.mxu0 %v256
    %283 = vmatprep.subr.bf16.mxu0 0
    %284 = vmatpush1.bf16.msra.mxu0 %v255
    %285 = vmatprep.subr.bf16.mxu0 0
    %286 = vmatpush1.bf16.msra.mxu0 %v254
    %287 = vmatprep.subr.bf16.mxu0 0
    %288 = vmatpush1.bf16.msra.mxu0 %v253
    %289 = vmatprep.subr.bf16.mxu0 0
    %290 = vmatpush1.bf16.msra.mxu0 %v252
    %291 = vmatprep.subr.bf16.mxu0 0
    %292 = vmatpush1.bf16.msra.mxu0 %v251
    %293 = vmatprep.subr.bf16.mxu0 0
    %294 = vmatpush1.bf16.msra.mxu0 %v250
    %295 = vmatprep.subr.bf16.mxu0 0
    %296 = vmatpush1.bf16.msra.mxu0 %v249
    %297 = vmatprep.subr.bf16.mxu0 0
    %298 = vmatpush2.bf16.msra.mxu0 %v264
    %299 = vmatprep.subr.bf16.mxu0 0
    %300 = vmatpush2.bf16.msra.mxu0 %v263
    %301 = vmatprep.subr.bf16.mxu0 0
    %302 = vmatpush2.bf16.msra.mxu0 %v262
    %303 = vmatprep.subr.bf16.mxu0 0
    %304 = vmatpush2.bf16.msra.mxu0 %v261
    %305 = vmatprep.subr.bf16.mxu0 0
    %306 = vmatpush2.bf16.msra.mxu0 %v260
    %307 = vmatprep.subr.bf16.mxu0 0
    %308 = vmatpush2.bf16.msra.mxu0 %v259
    %309 = vmatprep.subr.bf16.mxu0 0
    %310 = vmatpush2.bf16.msra.mxu0 %v258
    %311 = vmatprep.subr.bf16.mxu0 0
    %312 = vmatpush2.bf16.msra.mxu0 %v257
    %313 = vmatprep.mubr.bf16.mxu0 %v154
    %314 = vmatmul.mubr.bf16.gmra.mxu0 %v153
    %v315 = vpop.f32.mrf.mxu0
    %v316 = vadd.f32 %v103, %v315
    %v317 = vpop.f32.mrf.mxu0
    %v318 = vpop.f32.mrf.mxu0
    %v319 = vadd.f32 %v103, %v318
    %v320 = vpop.f32.mrf.mxu0
    %321 = vmatprep.mubr.bf16.mxu0 %v156
    %322 = vmatmul.mubr.bf16.gmra.mxu0 %v155
    %v323 = vpop.f32.mrf.mxu0
    %v324 = vadd.f32 %v103, %v323
    %v325 = vpop.f32.mrf.mxu0
    %v326 = vpop.f32.mrf.mxu0
    %v327 = vadd.f32 %v103, %v326
    %v328 = vpop.f32.mrf.mxu0
    %329 = vmatprep.mubr.bf16.mxu0 %v158
    %330 = vmatmul.mubr.bf16.gmra.mxu0 %v157
    %v331 = vpop.f32.mrf.mxu0
    %v332 = vadd.f32 %v103, %v331
    %v333 = vpop.f32.mrf.mxu0
    %v334 = vpop.f32.mrf.mxu0
    %v335 = vadd.f32 %v103, %v334
    %v336 = vpop.f32.mrf.mxu0
    %337 = vmatprep.mubr.bf16.mxu0 %v160
    %338 = vmatmul.mubr.bf16.gmra.mxu0 %v159
    %v339 = vpop.f32.mrf.mxu0
    %v340 = vadd.f32 %v103, %v339
    %v341 = vpop.f32.mrf.mxu0
    %v342 = vpop.f32.mrf.mxu0
    %v343 = vadd.f32 %v103, %v342
    %v344 = vpop.f32.mrf.mxu0
    %345 = vmatprep.mubr.bf16.mxu0 %v162
    %346 = vmatmul.mubr.bf16.gmra.mxu0 %v161
    %v347 = vpop.f32.mrf.mxu0
    %v348 = vadd.f32 %v103, %v347
    %v349 = vpop.f32.mrf.mxu0
    %v350 = vpop.f32.mrf.mxu0
    %v351 = vadd.f32 %v103, %v350
    %v352 = vpop.f32.mrf.mxu0
    %353 = vmatprep.mubr.bf16.mxu0 %v164
    %354 = vmatmul.mubr.bf16.gmra.mxu0 %v163
    %v355 = vpop.f32.mrf.mxu0
    %v356 = vadd.f32 %v103, %v355
    %v357 = vpop.f32.mrf.mxu0
    %v358 = vpop.f32.mrf.mxu0
    %v359 = vadd.f32 %v103, %v358
    %v360 = vpop.f32.mrf.mxu0
    %361 = vmatprep.mubr.bf16.mxu0 %v166
    %362 = vmatmul.mubr.bf16.gmra.mxu0 %v165
    %v363 = vpop.f32.mrf.mxu0
    %v364 = vadd.f32 %v103, %v363
    %v365 = vpop.f32.mrf.mxu0
    %v366 = vpop.f32.mrf.mxu0
    %v367 = vadd.f32 %v103, %v366
    %v368 = vpop.f32.mrf.mxu0
    %369 = vmatprep.mubr.bf16.mxu0 %v168
    %370 = vmatmul.mubr.bf16.gmra.mxu0 %v167
    %v371 = vpop.f32.mrf.mxu0
    %v372 = vadd.f32 %v103, %v371
    %v373 = vpop.f32.mrf.mxu0
    %v374 = vpop.f32.mrf.mxu0
    %v375 = vadd.f32 %v103, %v374
    %v376 = vpop.f32.mrf.mxu0
    %377 = vdwg.mxu0
    %378 = vadd.xlane.f32.xlu0 %v316
    %v379 = vpop.xlane.xlu0 %378
    %380 = vadd.xlane.f32.xlu0 %v319
    %v381 = vpop.xlane.xlu0 %380
    %382 = vadd.xlane.f32.xlu0 %v324
    %v383 = vpop.xlane.xlu0 %382
    %384 = vadd.xlane.f32.xlu0 %v327
    %v385 = vpop.xlane.xlu0 %384
    %386 = vadd.xlane.f32.xlu0 %v332
    %v387 = vpop.xlane.xlu0 %386
    %388 = vadd.xlane.f32.xlu0 %v335
    %v389 = vpop.xlane.xlu0 %388
    %390 = vadd.xlane.f32.xlu0 %v340
    %v391 = vpop.xlane.xlu0 %390
    %392 = vadd.xlane.f32.xlu0 %v343
    %v393 = vpop.xlane.xlu0 %392
    %394 = vadd.xlane.f32.xlu0 %v348
    %v395 = vpop.xlane.xlu0 %394
    %396 = vadd.xlane.f32.xlu0 %v351
    %v397 = vpop.xlane.xlu0 %396
    %398 = vadd.xlane.f32.xlu0 %v356
    %v399 = vpop.xlane.xlu0 %398
    %400 = vadd.xlane.f32.xlu0 %v359
    %v401 = vpop.xlane.xlu0 %400
    %402 = vadd.xlane.f32.xlu0 %v364
    %v403 = vpop.xlane.xlu0 %402
    %404 = vadd.xlane.f32.xlu0 %v367
    %v405 = vpop.xlane.xlu0 %404
    %406 = vadd.xlane.f32.xlu0 %v372
    %v407 = vpop.xlane.xlu0 %406
    %408 = vadd.xlane.f32.xlu0 %v375
    %v409 = vpop.xlane.xlu0 %408
    %v410 = vmul.f32 %v316, %v316
    %v411 = vmul.f32 %v319, %v319
    %v412 = vmul.f32 %v324, %v324
    %v413 = vmul.f32 %v327, %v327
    %v414 = vmul.f32 %v332, %v332
    %v415 = vmul.f32 %v335, %v335
    %v416 = vmul.f32 %v340, %v340
    %v417 = vmul.f32 %v343, %v343
    %v418 = vmul.f32 %v348, %v348
    %v419 = vmul.f32 %v351, %v351
    %v420 = vmul.f32 %v356, %v356
    %v421 = vmul.f32 %v359, %v359
    %v422 = vmul.f32 %v364, %v364
    %v423 = vmul.f32 %v367, %v367
    %v424 = vmul.f32 %v372, %v372
    %v425 = vmul.f32 %v375, %v375
    %426 = vadd.xlane.f32.xlu0 %v410
    %v427 = vpop.xlane.xlu0 %426
    %428 = vadd.xlane.f32.xlu0 %v411
    %v429 = vpop.xlane.xlu0 %428
    %430 = vadd.xlane.f32.xlu0 %v412
    %v431 = vpop.xlane.xlu0 %430
    %432 = vadd.xlane.f32.xlu0 %v413
    %v433 = vpop.xlane.xlu0 %432
    %434 = vadd.xlane.f32.xlu0 %v414
    %v435 = vpop.xlane.xlu0 %434
    %436 = vadd.xlane.f32.xlu0 %v415
    %v437 = vpop.xlane.xlu0 %436
    %438 = vadd.xlane.f32.xlu0 %v416
    %v439 = vpop.xlane.xlu0 %438
    %440 = vadd.xlane.f32.xlu0 %v417
    %v441 = vpop.xlane.xlu0 %440
    %442 = vadd.xlane.f32.xlu0 %v418
    %v443 = vpop.xlane.xlu0 %442
    %444 = vadd.xlane.f32.xlu0 %v419
    %v445 = vpop.xlane.xlu0 %444
    %446 = vadd.xlane.f32.xlu0 %v420
    %v447 = vpop.xlane.xlu0 %446
    %448 = vadd.xlane.f32.xlu0 %v421
    %v449 = vpop.xlane.xlu0 %448
    %450 = vadd.xlane.f32.xlu0 %v422
    %v451 = vpop.xlane.xlu0 %450
    %452 = vadd.xlane.f32.xlu0 %v423
    %v453 = vpop.xlane.xlu0 %452
    %454 = vadd.xlane.f32.xlu0 %v424
    %v455 = vpop.xlane.xlu0 %454
    %456 = vadd.xlane.f32.xlu0 %v425
    %v457 = vpop.xlane.xlu0 %456
    %v458 = vmul.f32 %v379, 0.0078125
    %v459 = vmul.f32 %v381, 0.0078125
    %v460 = vmul.f32 %v383, 0.0078125
    %v461 = vmul.f32 %v385, 0.0078125
    %v462 = vmul.f32 %v387, 0.0078125
    %v463 = vmul.f32 %v389, 0.0078125
    %v464 = vmul.f32 %v391, 0.0078125
    %v465 = vmul.f32 %v393, 0.0078125
    %v466 = vmul.f32 %v395, 0.0078125
    %v467 = vmul.f32 %v397, 0.0078125
    %v468 = vmul.f32 %v399, 0.0078125
    %v469 = vmul.f32 %v401, 0.0078125
    %v470 = vmul.f32 %v403, 0.0078125
    %v471 = vmul.f32 %v405, 0.0078125
    %v472 = vmul.f32 %v407, 0.0078125
    %v473 = vmul.f32 %v409, 0.0078125
    %v474 = vmul.f32 %v427, 0.0078125
    %v475 = vmul.f32 %v429, 0.0078125
    %v476 = vmul.f32 %v431, 0.0078125
    %v477 = vmul.f32 %v433, 0.0078125
    %v478 = vmul.f32 %v435, 0.0078125
    %v479 = vmul.f32 %v437, 0.0078125
    %v480 = vmul.f32 %v439, 0.0078125
    %v481 = vmul.f32 %v441, 0.0078125
    %v482 = vmul.f32 %v443, 0.0078125
    %v483 = vmul.f32 %v445, 0.0078125
    %v484 = vmul.f32 %v447, 0.0078125
    %v485 = vmul.f32 %v449, 0.0078125
    %v486 = vmul.f32 %v451, 0.0078125
    %v487 = vmul.f32 %v453, 0.0078125
    %v488 = vmul.f32 %v455, 0.0078125
    %v489 = vmul.f32 %v457, 0.0078125
    %v490 = vmul.f32 %v458, %v458
    %v491 = vmul.f32 %v459, %v459
    %v492 = vmul.f32 %v460, %v460
    %v493 = vmul.f32 %v461, %v461
    %v494 = vmul.f32 %v462, %v462
    %v495 = vmul.f32 %v463, %v463
    %v496 = vmul.f32 %v464, %v464
    %v497 = vmul.f32 %v465, %v465
    %v498 = vmul.f32 %v466, %v466
    %v499 = vmul.f32 %v467, %v467
    %v500 = vmul.f32 %v468, %v468
    %v501 = vmul.f32 %v469, %v469
    %v502 = vmul.f32 %v470, %v470
    %v503 = vmul.f32 %v471, %v471
    %v504 = vmul.f32 %v472, %v472
    %v505 = vmul.f32 %v473, %v473
    %v506 = vsub.f32 %v474, %v490
    %v507 = vsub.f32 %v475, %v491
    %v508 = vsub.f32 %v476, %v492
    %v509 = vsub.f32 %v477, %v493
    %v510 = vsub.f32 %v478, %v494
    %v511 = vsub.f32 %v479, %v495
    %v512 = vsub.f32 %v480, %v496
    %v513 = vsub.f32 %v481, %v497
    %v514 = vsub.f32 %v482, %v498
    %v515 = vsub.f32 %v483, %v499
    %v516 = vsub.f32 %v484, %v500
    %v517 = vsub.f32 %v485, %v501
    %v518 = vsub.f32 %v486, %v502
    %v519 = vsub.f32 %v487, %v503
    %v520 = vsub.f32 %v488, %v504
    %v521 = vsub.f32 %v489, %v505
    %v522 = vadd.f32 %v506, 1e-05
    %v523 = vadd.f32 %v507, 1e-05
    %v524 = vadd.f32 %v508, 1e-05
    %v525 = vadd.f32 %v509, 1e-05
    %v526 = vadd.f32 %v510, 1e-05
    %v527 = vadd.f32 %v511, 1e-05
    %v528 = vadd.f32 %v512, 1e-05
    %v529 = vadd.f32 %v513, 1e-05
    %v530 = vadd.f32 %v514, 1e-05
    %v531 = vadd.f32 %v515, 1e-05
    %v532 = vadd.f32 %v516, 1e-05
    %v533 = vadd.f32 %v517, 1e-05
    %v534 = vadd.f32 %v518, 1e-05
    %v535 = vadd.f32 %v519, 1e-05
    %v536 = vadd.f32 %v520, 1e-05
    %v537 = vadd.f32 %v521, 1e-05
    %v538 = vrsqrt.pop %v522
    %v539 = vrsqrt.pop %v523
    %v540 = vrsqrt.pop %v524
    %v541 = vrsqrt.pop %v525
    %v542 = vrsqrt.pop %v526
    %v543 = vrsqrt.pop %v527
    %v544 = vrsqrt.pop %v528
    %v545 = vrsqrt.pop %v529
    %v546 = vrsqrt.pop %v530
    %v547 = vrsqrt.pop %v531
    %v548 = vrsqrt.pop %v532
    %v549 = vrsqrt.pop %v533
    %v550 = vrsqrt.pop %v534
    %v551 = vrsqrt.pop %v535
    %v552 = vrsqrt.pop %v536
    %v553 = vrsqrt.pop %v537
    %v554 = vsub.f32 %v316, %v458
    %v555 = vsub.f32 %v319, %v459
    %v556 = vsub.f32 %v324, %v460
    %v557 = vsub.f32 %v327, %v461
    %v558 = vsub.f32 %v332, %v462
    %v559 = vsub.f32 %v335, %v463
    %v560 = vsub.f32 %v340, %v464
    %v561 = vsub.f32 %v343, %v465
    %v562 = vsub.f32 %v348, %v466
    %v563 = vsub.f32 %v351, %v467
    %v564 = vsub.f32 %v356, %v468
    %v565 = vsub.f32 %v359, %v469
    %v566 = vsub.f32 %v364, %v470
    %v567 = vsub.f32 %v367, %v471
    %v568 = vsub.f32 %v372, %v472
    %v569 = vsub.f32 %v375, %v473
    %v570 = vmul.f32 %v554, %v538
    %v571 = vmul.f32 %v555, %v539
    %v572 = vmul.f32 %v556, %v540
    %v573 = vmul.f32 %v557, %v541
    %v574 = vmul.f32 %v558, %v542
    %v575 = vmul.f32 %v559, %v543
    %v576 = vmul.f32 %v560, %v544
    %v577 = vmul.f32 %v561, %v545
    %v578 = vmul.f32 %v562, %v546
    %v579 = vmul.f32 %v563, %v547
    %v580 = vmul.f32 %v564, %v548
    %v581 = vmul.f32 %v565, %v549
    %v582 = vmul.f32 %v566, %v550
    %v583 = vmul.f32 %v567, %v551
    %v584 = vmul.f32 %v568, %v552
    %v585 = vmul.f32 %v569, %v553
    %v586 = vld [vmem:[%s3] sm:$0x1]
    %v588 = vlaneseq
    %v589 = vshrl.u32 %v588, 7
    %v590 = vsub.s32 0, %v589
    %v591 = vrot.slane %v586, %v590
    %v593 = vmul.f32 %v570, %v591
    %v594 = vmul.f32 %v571, %v591
    %v595 = vmul.f32 %v572, %v591
    %v596 = vmul.f32 %v573, %v591
    %v597 = vmul.f32 %v574, %v591
    %v598 = vmul.f32 %v575, %v591
    %v599 = vmul.f32 %v576, %v591
    %v600 = vmul.f32 %v577, %v591
    %v601 = vmul.f32 %v578, %v591
    %v602 = vmul.f32 %v579, %v591
    %v603 = vmul.f32 %v580, %v591
    %v604 = vmul.f32 %v581, %v591
    %v605 = vmul.f32 %v582, %v591
    %v606 = vmul.f32 %v583, %v591
    %v607 = vmul.f32 %v584, %v591
    %v608 = vmul.f32 %v585, %v591
    %v609 = vld [vmem:[%s4] sm:$0x1]
    %v611 = vlaneseq
    %v612 = vshrl.u32 %v611, 7
    %v613 = vsub.s32 0, %v612
    %v614 = vrot.slane %v609, %v613
    %v616 = vadd.f32 %v593, %v614
    %v617 = vadd.f32 %v594, %v614
    %v618 = vadd.f32 %v595, %v614
    %v619 = vadd.f32 %v596, %v614
    %v620 = vadd.f32 %v597, %v614
    %v621 = vadd.f32 %v598, %v614
    %v622 = vadd.f32 %v599, %v614
    %v623 = vadd.f32 %v600, %v614
    %v624 = vadd.f32 %v601, %v614
    %v625 = vadd.f32 %v602, %v614
    %v626 = vadd.f32 %v603, %v614
    %v627 = vadd.f32 %v604, %v614
    %v628 = vadd.f32 %v605, %v614
    %v629 = vadd.f32 %v606, %v614
    %v630 = vadd.f32 %v607, %v614
    %v631 = vadd.f32 %v608, %v614
    %632 = vst [vmem:[#allocation7] sm:$0xff] %v616
    %633 = vst [vmem:[#allocation7 + $0x8] sm:$0xff] %v617
    %634 = vst [vmem:[#allocation7 + $0x10] sm:$0xff] %v618
    %635 = vst [vmem:[#allocation7 + $0x18] sm:$0xff] %v619
    %636 = vst [vmem:[#allocation7 + $0x20] sm:$0xff] %v620
    %637 = vst [vmem:[#allocation7 + $0x28] sm:$0xff] %v621
    %638 = vst [vmem:[#allocation7 + $0x30] sm:$0xff] %v622
    %639 = vst [vmem:[#allocation7 + $0x38] sm:$0xff] %v623
    %640 = vst [vmem:[#allocation7 + $0x40] sm:$0xff] %v624
    %641 = vst [vmem:[#allocation7 + $0x48] sm:$0xff] %v625
    %642 = vst [vmem:[#allocation7 + $0x50] sm:$0xff] %v626
    %643 = vst [vmem:[#allocation7 + $0x58] sm:$0xff] %v627
    %644 = vst [vmem:[#allocation7 + $0x60] sm:$0xff] %v628
    %645 = vst [vmem:[#allocation7 + $0x68] sm:$0xff] %v629
    %646 = vst [vmem:[#allocation7 + $0x70] sm:$0xff] %v630
    %647 = vst [vmem:[#allocation7 + $0x78] sm:$0xff] %v631
    // Predicated region
    $region30: #{tpu_custom_call.1} parent=1 // pred_check
      _
    $region31: #{tpu_custom_call.1} parent=1 // pred_check_branch
      %649 = sbr.rel (0) target = $region33
    $region32: #{tpu_custom_call.1} parent=1 // pred_region
      %s651 = ssub.s32 2048, 2048
      %652 = vsyncadd [#allocation4], %s651
      %s653 = sshll.u32 [#allocation7], 4
      %s654 = int_to_ptr.vmem [resolvable:$true] %s653
      %659 = dma.vmem_to_hbm [thread:$0]  %s654, 2048, %s5, [#allocation4], 128, 128, 8
    $region33: #{tpu_custom_call.1} parent=1 // pred_fallthru
      _
    // Predicated region
    $region34: #{tpu_custom_call.1} parent=1 // pred_check
      _
    $region35: #{tpu_custom_call.1} parent=1 // pred_check_branch
      %661 = sbr.rel (0) target = $region37
    $region36: #{tpu_custom_call.1} parent=1 // pred_region
      %662 = dma.done [#allocation4], 2048
    $region37: #{tpu_custom_call.1} parent=1 // pred_fallthru
      _
    %663 = vsyncpa [#allocation3], 1
    %664 = vsyncpa [#allocation6], 1
    %665 = vsyncpa [#allocation4], 1

</llo_original>
